<compile_context>
chip_gen: v5e
topology: v5e:2x2
jax: 0.10.0
libtpu: 0.0.40
codegen_flags: <defaults>
</compile_context>

<pallas_src>
import jax
import jax.numpy as jnp
from jax import lax
from jax.experimental import pallas as pl
from jax.experimental.pallas import tpu as pltpu


def _round_up(v, m):
    return ((v + m - 1) // m) * m


def _vmem_capacity_bytes():
    """Best-effort physical VMEM capacity of the local TPU (bytes)."""
    try:
        cap = getattr(pltpu.get_tpu_info(), "vmem_capacity_bytes", None)
        if cap:
            return int(cap)
    except Exception:
        pass
    try:
        kind = jax.devices()[0].device_kind.lower()
    except Exception:
        kind = ""
    if "v7" in kind:
        return 64 << 20            # v7x: 64 MiB per TensorCore
    return 128 << 20               # v5e / v6e


def _pick_tile_b(batch, input_dim, itemsize, vmem_cap):
    """Pick a batch tile sized against the *lane-padded* VMEM footprint.

    With input_dim < 128 the x block's minor dim pads to 128 lanes in VMEM, so
    one buffer costs tile_b * 128 * itemsize bytes regardless of input_dim.
    Budget ~1/8 of physical VMEM per x buffer (x is double-buffered), giving
    tile_b ~16384 (f32) on v7x and ~32768 on v5e/v6e: big enough to amortize
    the ~0.35us per-grid-step overhead, small enough to never thrash VMEM.
    """
    lane_bytes = _round_up(max(input_dim, 128), 128) * itemsize
    target = ((vmem_cap // 8) // lane_bytes) // 128 * 128
    target = max(1024, min(target, 65536))
    if batch <= target:
        if batch >= 2048:
            # Keep >=2 grid steps: shards across v7x's 2 TensorCores and keeps
            # the input/output pipeline overlapped (harmless on v5e/v6e).
            return _round_up(pl.cdiv(batch, 2), 128)
        # Small batch: single tile, rounded to a full multiple of 128 lanes so
        # output stores have no masked trailing lane group.
        return _round_up(max(batch, 128), 128)
    return target


def duel_net_kernel(x_ref, wt_ref, bt_ref, o_ref):
    """One fused GEMM per batch tile, emitted transposed (lane-dense output).

    x_ref : (TILE_B, input_dim)   streamed per grid step (incoming dtype)
    wt_ref: (A_pad, input_dim)    resident fused weight (transposed)
    bt_ref: (A_pad, 1)            resident fused bias (f32)
    o_ref : (A_pad, TILE_B)       q^T for this tile (TILE_B on the lane axis)
    """
    # q^T[a, b] = sum_k wt[a, k] * x[b, k]  -- contract the lane (feature) dims.
    qt = lax.dot_general(
        wt_ref[...], x_ref[...],
        dimension_numbers=(((1,), (1,)), ((), ())),
        preferred_element_type=jnp.float32,
    )                                              # (A_pad, TILE_B), f32 acc
    o_ref[...] = (qt + bt_ref[...]).astype(o_ref.dtype)


def duel_net_forward(x, wv, bv, wa, ba, *, input_dim, action_number,
                     out_dtype=jnp.float32, tile_b=None):
    """Forward pass matching the PyTorch DuelNet. Returns (B, action_number)."""
    B = x.shape[0]
    assert x.shape == (B, input_dim)
    x_dtype = x.dtype                       # stream x as-is: no extra HBM pass
    itemsize = jnp.dtype(x_dtype).itemsize
    out_itemsize = jnp.dtype(out_dtype).itemsize
    value_in_dim = input_dim // 2
    a_pad = _round_up(action_number, 8)     # 6 -> 8: full (8,128) output vregs

    # ---- one-time algebraic fusion of the two streams (tiny, wrapper cost) --
    # value rows: wv broadcast over actions; advantage rows: wa minus its
    # per-feature mean over actions; bias folds bv + (ba - mean(ba)).
    wa_centered = wa - jnp.mean(wa, axis=1, keepdims=True)             # (adv_in, A)
    wv_broadcast = jnp.broadcast_to(
        jnp.reshape(wv, (value_in_dim, 1)), (value_in_dim, action_number))
    w_fused = jnp.concatenate([wv_broadcast, wa_centered], axis=0)     # (in, A)
    w_fused = jnp.pad(w_fused, ((0, 0), (0, a_pad - action_number)))   # zero cols
    w_t = jnp.asarray(w_fused.T, dtype=x_dtype)                        # (a_pad, in)
    b_fused = (jnp.reshape(bv, (-1,))[0]
               + (jnp.reshape(ba, (-1,)) - jnp.mean(ba)))              # (A,)
    b_t = jnp.zeros((a_pad, 1), jnp.float32).at[:action_number, 0].set(
        b_fused.astype(jnp.float32))                                   # (a_pad, 1)

    # ---- tiling / VMEM budget (lane-padded, generation-aware) ---------------
    vmem_cap = _vmem_capacity_bytes()
    if tile_b is None:
        tile_b = _pick_tile_b(B, input_dim, itemsize, vmem_cap)
    num_tiles = pl.cdiv(B, tile_b)
    b_total = num_tiles * tile_b            # output blocks always fully in-bounds

    x_buf_bytes = tile_b * _round_up(max(input_dim, 128), 128) * itemsize
    out_buf_bytes = a_pad * tile_b * out_itemsize
    vmem_limit = int(min(vmem_cap - (8 << 20),
                         max(2 * x_buf_bytes + 2 * out_buf_bytes + (4 << 20),
                             32 << 20)))

    cost = pl.CostEstimate(
        flops=2 * B * input_dim * a_pad,
        transcendentals=0,
        bytes_accessed=(B * input_dim * itemsize            # x read (no pad/cast pass)
                        + a_pad * input_dim * itemsize       # fused W read
                        + a_pad * 4                          # bias read
                        + a_pad * b_total * out_itemsize),   # q^T write
    )

    qt = pl.pallas_call(
        duel_net_kernel,
        out_shape=jax.ShapeDtypeStruct((a_pad, b_total), out_dtype),
        grid_spec=pltpu.PrefetchScalarGridSpec(
            num_scalar_prefetch=0,
            grid=(num_tiles,),
            in_specs=[
                # TODO(synk): if the upstream producer can emit x as
                # (input_dim, B) (features on sublanes, batch on lanes), switch
                # this block to (input_dim, tile_b) and contract dim 0 in the
                # kernel for fully lane-dense streaming; do NOT add a wrapper
                # transpose (that would be an extra full HBM pass).
                pl.BlockSpec((tile_b, input_dim), lambda i: (i, 0)),      # x tile
                pl.BlockSpec((a_pad, input_dim), lambda i: (0, 0)),       # W^T resident
                pl.BlockSpec((a_pad, 1), lambda i: (0, 0)),               # bias resident
            ],
            out_specs=pl.BlockSpec((a_pad, tile_b), lambda i: (0, i)),
        ),
        compiler_params=pltpu.CompilerParams(
            dimension_semantics=("parallel",),   # shard batch tiles across TCs (v7x)
            vmem_limit_bytes=vmem_limit,
        ),
        cost_estimate=cost,
    )(x, w_t, b_t)

    # Tiny (a_pad, B) slab back to the module's (B, action_number) layout.
    # The [:, :B] slice also drops the garbage columns produced by the ragged
    # last tile's out-of-range x rows, and [:action_number] drops padded rows.
    return qt[:action_number, :B].T


def make_params(key, input_dim, action_number):
    """Deterministic synthetic parameters (nn.Linear weights, stored as (in, out))."""
    value_in_dim = input_dim // 2
    advantage_in_dim = (input_dim + 1) // 2
    k1, k2, k3, k4 = jax.random.split(key, 4)
    wv = jax.random.normal(k1, (value_in_dim, 1), jnp.float32) * 0.1
    bv = jax.random.normal(k2, (1, 1), jnp.float32) * 0.1
    wa = jax.random.normal(k3, (advantage_in_dim, action_number), jnp.float32) * 0.1
    ba = jax.random.normal(k4, (1, action_number), jnp.float32) * 0.1
    return wv, bv, wa, ba


def duel_net_ref(x, wv, bv, wa, ba, *, input_dim):
    """Pure-JAX reference matching the PyTorch forward."""
    value_in_dim = input_dim // 2
    advantage_in_dim = (input_dim + 1) // 2
    v = x[:, :value_in_dim] @ wv + bv
    adv = x[:, input_dim - advantage_in_dim:] @ wa + ba
    return v + (adv - adv.mean(axis=1, keepdims=True))


if __name__ == "__main__":
    input_dim = 32
    action_number = 6
    batch = 64

    key = jax.random.PRNGKey(0)
    kx, kp = jax.random.split(key)
    x = jax.random.normal(kx, (batch, input_dim), jnp.float32)
    wv, bv, wa, ba = make_params(kp, input_dim, action_number)
    q_ref = duel_net_ref(x, wv, bv, wa, ba, input_dim=input_dim)

    # fp32 path, single lane-aligned tile: exact match against the reference.
    q32 = duel_net_forward(x, wv, bv, wa, ba,
                           input_dim=input_dim, action_number=action_number)
    q32 = jax.block_until_ready(q32)
    assert q32.shape == (batch, action_number)
    assert jnp.allclose(q32, q_ref, atol=1e-5, rtol=1e-5), "fp32 mismatch vs reference"

    # Ragged multi-tile path (grid=2, last tile partially out of range) —
    # exercises the no-pad boundary handling at a small size.
    x2 = jax.random.normal(kx, (200, input_dim), jnp.float32)
    q_ref2 = duel_net_ref(x2, wv, bv, wa, ba, input_dim=input_dim)
    q2 = duel_net_forward(x2, wv, bv, wa, ba, input_dim=input_dim,
                          action_number=action_number, tile_b=128)
    q2 = jax.block_until_ready(q2)
    assert q2.shape == (200, action_number)
    assert jnp.allclose(q2, q_ref2, atol=1e-5, rtol=1e-5), "ragged-tile mismatch"

    # bf16 path: only used when x already arrives as bf16 upstream (the kernel
    # streams it directly; no wrapper cast pass). f32 MXU accumulation.
    x16 = x.astype(jnp.bfloat16)
    q16 = duel_net_forward(x16, wv, bv, wa, ba,
                           input_dim=input_dim, action_number=action_number)
    q16 = jax.block_until_ready(q16)
    assert q16.shape == (batch, action_number)
    assert jnp.allclose(q16, q_ref, atol=3e-2, rtol=3e-2), "bf16 mismatch vs reference"

    print("KERNEL_OK")
</pallas_src>

<mosaic_0001>
module attributes {stable_mosaic.version = 11 : i64} {
  func.func @duel_net_kernel(%arg0: i32, %arg1: memref<128x32xf32, #tpu.memory_space<vmem>>, %arg2: memref<8x32xf32, #tpu.memory_space<vmem>>, %arg3: memref<8x1xf32, #tpu.memory_space<vmem>>, %arg4: memref<8x128xf32, #tpu.memory_space<vmem>>) attributes {dimension_semantics = [#tpu.dimension_semantics<parallel>], iteration_bounds = array<i64: 1>, scalar_prefetch = 0 : i64, scratch_operands = 0 : i64, tpu.core_type = #tpu.core_type<tc>, window_params = [{transform_indices = @transform_0, window_bounds = array<i64: 128, 32>}, {pipeline_mode = #tpu.pipeline_mode<synchronous>, transform_indices = @transform_1, window_bounds = array<i64: 8, 32>}, {pipeline_mode = #tpu.pipeline_mode<synchronous>, transform_indices = @transform_2, window_bounds = array<i64: 8, 1>}, {transform_indices = @transform_3, window_bounds = array<i64: 8, 128>}]} {
    %c0 = arith.constant 0 : index
    %c0_0 = arith.constant 0 : index
    %0 = vector.load %arg2[%c0, %c0_0] : memref<8x32xf32, #tpu.memory_space<vmem>>, vector<8x32xf32>
    %c0_1 = arith.constant 0 : index
    %c0_2 = arith.constant 0 : index
    %1 = vector.load %arg1[%c0_1, %c0_2] : memref<128x32xf32, #tpu.memory_space<vmem>>, vector<128x32xf32>
    %cst = arith.constant dense<0.000000e+00> : vector<8x128xf32>
    %2 = tpu.matmul %0, %1, %cst {dimension_numbers = #tpu.dot_dimension_numbers<[1], [1], [0], [0], [0, 0, 1, 0], [], []>} : vector<8x32xf32>, vector<128x32xf32>, vector<8x128xf32> -> vector<8x128xf32>
    %c0_3 = arith.constant 0 : index
    %c0_4 = arith.constant 0 : index
    %3 = vector.load %arg3[%c0_3, %c0_4] : memref<8x1xf32, #tpu.memory_space<vmem>>, vector<8x1xf32>
    %4 = vector.broadcast %3 : vector<8x1xf32> to vector<8x128xf32>
    %5 = arith.addf %2, %4 : vector<8x128xf32>
    %c0_5 = arith.constant 0 : index
    %c0_6 = arith.constant 0 : index
    %6 = vector.load %arg4[%c0_5, %c0_6] : memref<8x128xf32, #tpu.memory_space<vmem>>, vector<8x128xf32>
    tpu.vector_store %arg4[%c0_5, %c0_6], %5 {strides = array<i32>} : memref<8x128xf32, #tpu.memory_space<vmem>>, vector<8x128xf32>,
    return
  }
  func.func @transform_0(%arg0: i32) -> (i32, i32) {
    %c0_i32 = arith.constant 0 : i32
    %c0_i32_0 = arith.constant 0 : i32
    return %arg0, %c0_i32 : i32, i32
  }
  func.func @transform_1(%arg0: i32) -> (i32, i32) {
    %c0_i32 = arith.constant 0 : i32
    %c0_i32_0 = arith.constant 0 : i32
    %c0_i32_1 = arith.constant 0 : i32
    return %c0_i32, %c0_i32_0 : i32, i32
  }
  func.func @transform_2(%arg0: i32) -> (i32, i32) {
    %c0_i32 = arith.constant 0 : i32
    %c0_i32_0 = arith.constant 0 : i32
    %c0_i32_1 = arith.constant 0 : i32
    return %c0_i32, %c0_i32_0 : i32, i32
  }
  func.func @transform_3(%arg0: i32) -> (i32, i32) {
    %c0_i32 = arith.constant 0 : i32
    %c0_i32_0 = arith.constant 0 : i32
    return %c0_i32, %arg0 : i32, i32
  }
}

</mosaic_0001>

<llo_original>
// kernel: tpu_custom_call.1
$region0: #{tpu_custom_call.1}
  #allocation0 [shape = 'u32[]', space=smem, size = 0x4, offset = 0x4, fixed_abs, tag = 'smem constant byte address 0x4 - core index']
  #allocation1 [shape = 'u32[72,128]{1,0:T(1,128)}', space=vmem, size = 0x9000, scoped, tag = 'internal scratch']
  %s0 = inlined_call_operand.vmem [shape: f32[64,32], index: 0, kind: input, shape index: {}]
  %s1 = inlined_call_operand.vmem [shape: f32[8,32], index: 1, kind: input, shape index: {}]
  %s2 = inlined_call_operand.vmem [shape: f32[8,1], index: 2, kind: input, shape index: {}]
  %s3 = inlined_call_operand.hbm [shape: f32[8,128], index: 3, kind: output, shape index: {}]
  %s4 = sld [smem:[#allocation0]]
  $region22: #{tpu_custom_call.1} parent=0
    _
  %s6 = ssub.s32 1, %s4
  %s7 = scalar_select 0, %s6, %s4
  $region1: #{tpu_custom_call.1} parent=0
    #allocation2 [shape = 'u8[4096]{0}', space=vmem, size = 0x1000, scoped, tag = 'output window, operand 0, single buffered']
    #allocation3 [shape = 's32[1]{0}', space=sflag, size = 0x4, scoped, tag = 'scoped memory for tpu_custom_call.1']
    %8 = vsyncpa [#allocation3], 0
    // Predicated region
    $region2: #{tpu_custom_call.1} parent=1 // pred_check
      _
    $region3: #{tpu_custom_call.1} parent=1 // pred_check_branch
      %10 = sbr.rel (0) target = $region5
    $region4: #{tpu_custom_call.1} parent=1 // pred_region
      _
    $region5: #{tpu_custom_call.1} parent=1 // pred_fallthru
      _
    // Predicated region
    $region6: #{tpu_custom_call.1} parent=1 // pred_check
      _
    $region7: #{tpu_custom_call.1} parent=1 // pred_check_branch
      %12 = sbr.rel (0) target = $region9
    $region8: #{tpu_custom_call.1} parent=1 // pred_region
      _
    $region9: #{tpu_custom_call.1} parent=1 // pred_fallthru
      _
    // Predicated region
    $region10: #{tpu_custom_call.1} parent=1 // pred_check
      _
    $region11: #{tpu_custom_call.1} parent=1 // pred_check_branch
      %14 = sbr.rel (0) target = $region13
    $region12: #{tpu_custom_call.1} parent=1 // pred_region
      _
    $region13: #{tpu_custom_call.1} parent=1 // pred_fallthru
      _
    %v15 = vld [vmem:[%s1] sm:$0xff]
    %v16 = vld [vmem:[%s0] sm:$0xff]
    %v17 = vld [vmem:[%s0 + $0x8] sm:$0xff]
    %v18 = vld [vmem:[%s0 + $0x10] sm:$0xff]
    %v19 = vld [vmem:[%s0 + $0x18] sm:$0xff]
    %v20 = vld [vmem:[%s0 + $0x20] sm:$0xff]
    %v21 = vld [vmem:[%s0 + $0x28] sm:$0xff]
    %v22 = vld [vmem:[%s0 + $0x30] sm:$0xff]
    %v23 = vld [vmem:[%s0 + $0x38] sm:$0xff]
    %v24 = vld [vmem:[%s0 + $0x40] sm:$0xff]
    %v25 = vld [vmem:[%s0 + $0x48] sm:$0xff]
    %v26 = vld [vmem:[%s0 + $0x50] sm:$0xff]
    %v27 = vld [vmem:[%s0 + $0x58] sm:$0xff]
    %v28 = vld [vmem:[%s0 + $0x60] sm:$0xff]
    %v29 = vld [vmem:[%s0 + $0x68] sm:$0xff]
    %v30 = vld [vmem:[%s0 + $0x70] sm:$0xff]
    %v31 = vld [vmem:[%s0 + $0x78] sm:$0xff]
    %v32 = vld [vmem:[%s2] sm:$0xff]
    %34 = vset.pattern.permute.xlu0 0
    %35 = vperm.xlu0 %34, %v32
    %v36 = vpop.permute.xlu0 %35
    %vm38 = vcmask 261120
    %v40 = vsel %vm38, %v15, 0
    %v43 = vsel %vm38, %v16, 0
    %v46 = vsel %vm38, %v17, 0
    %v49 = vsel %vm38, %v18, 0
    %v52 = vsel %vm38, %v19, 0
    %v55 = vsel %vm38, %v20, 0
    %v58 = vsel %vm38, %v21, 0
    %v61 = vsel %vm38, %v22, 0
    %v64 = vsel %vm38, %v23, 0
    %v67 = vsel %vm38, %v24, 0
    %v70 = vsel %vm38, %v25, 0
    %v73 = vsel %vm38, %v26, 0
    %v76 = vsel %vm38, %v27, 0
    %v79 = vsel %vm38, %v28, 0
    %v82 = vsel %vm38, %v29, 0
    %v85 = vsel %vm38, %v30, 0
    %v88 = vsel %vm38, %v31, 0
    %90 = vmatpush.xpose.msra.mxu0 %v88
    %91 = vmatpush.xpose.msra.mxu0 %v85
    %92 = vmatpush.xpose.msra.mxu0 %v82
    %93 = vmatpush.xpose.msra.mxu0 %v79
    %94 = vmatpush.xpose.msra.mxu0 %v76
    %95 = vmatpush.xpose.msra.mxu0 %v73
    %96 = vmatpush.xpose.msra.mxu0 %v70
    %97 = vmatpush.xpose.msra.mxu0 %v67
    %98 = vmatpush.xpose.msra.mxu0 %v64
    %99 = vmatpush.xpose.msra.mxu0 %v61
    %100 = vmatpush.xpose.msra.mxu0 %v58
    %101 = vmatpush.xpose.msra.mxu0 %v55
    %102 = vmatpush.xpose.msra.mxu0 %v52
    %103 = vmatpush.xpose.msra.mxu0 %v49
    %104 = vmatpush.xpose.msra.mxu0 %v46
    %105 = vmatpush.xpose.msra.mxu0 %v43
    %106 = vmatmul.f32.gmra.mxu0 %v40
    %v107 = vpop.f32.mrf.mxu0
    %v108 = vadd.f32 %v36, %v107
    %109 = vdwg.mxu0
    %110 = vst [vmem:[#allocation2] sm:$0xff] %v108
    // Predicated region
    $region14: #{tpu_custom_call.1} parent=1 // pred_check
      _
    $region15: #{tpu_custom_call.1} parent=1 // pred_check_branch
      %112 = sbr.rel (0) target = $region17
    $region16: #{tpu_custom_call.1} parent=1 // pred_region
      %114 = vsyncadd [#allocation3], 0
      %s116 = sshll.u32 [#allocation2], 4
      %s117 = int_to_ptr.vmem [resolvable:$true] %s116
      %s118 = sshll.u32 %s3, 4
      %s119 = int_to_ptr.hbm [resolvable:$true] %s118
      %121 = dma.vmem_to_hbm [thread:$0]  %s117, 128, %s119, [#allocation3]
    $region17: #{tpu_custom_call.1} parent=1 // pred_fallthru
      _
    // Predicated region
    $region18: #{tpu_custom_call.1} parent=1 // pred_check
      _
    $region19: #{tpu_custom_call.1} parent=1 // pred_check_branch
      %123 = sbr.rel (0) target = $region21
    $region20: #{tpu_custom_call.1} parent=1 // pred_region
      %125 = dma.done [#allocation3], 128
    $region21: #{tpu_custom_call.1} parent=1 // pred_fallthru
      _
    %126 = vsyncpa [#allocation3], 1

</llo_original>
